<compile_context>
chip_gen: v5e
topology: v5e:2x2
jax: 0.10.0
libtpu: 0.0.40
codegen_flags: <defaults>
</compile_context>

<pallas_src>
import functools

import jax
import jax.numpy as jnp
from jax.experimental import pallas as pl
from jax.experimental.pallas import tpu as pltpu

HIDDEN = 512


def _round_up(x, m):
    return ((x + m - 1) // m) * m


def dueling_dqn_kernel(x_ref, w1_ref, b1_ref, wh_ref, bh_ref, o_ref):
    # fc1 + ReLU: [tB, D] @ [D, 512] -> [tB, 512]   (f32 accumulation)
    h = jnp.dot(x_ref[...], w1_ref[...],
                preferred_element_type=jnp.float32) + b1_ref[...]
    h = jnp.maximum(h, 0.0)
    # Fused (V | A | zero-pad) head: [tB, 512] @ [512, N_pad] -> [tB, N_pad].
    # Single lane-dense output slab -> unmasked stores.
    o_ref[...] = (jnp.dot(h.astype(wh_ref.dtype), wh_ref[...],
                          preferred_element_type=jnp.float32)
                  + bh_ref[...]).astype(o_ref.dtype)


def _vmem_limit_bytes(tb, d, n_pad, act_bytes):
    """Conservative tile footprint (double-buffered) with 2x headroom,
    clamped to [32 MiB, 64 MiB] so it is valid on v5e/v6e (128 MiB VMEM)
    and v7x (64 MiB VMEM)."""
    x_tile = tb * d * act_bytes
    out_tile = tb * n_pad * 4
    w1 = d * HIDDEN * act_bytes
    wh = HIDDEN * n_pad * act_bytes
    biases = (HIDDEN + n_pad) * 4
    hidden = tb * HIDDEN * 4                      # in-kernel f32 intermediate
    est = 2 * (x_tile + out_tile + w1 + wh + biases) + 2 * hidden
    return int(min(max(2 * est, 32 * 1024 * 1024), 64 * 1024 * 1024))


@functools.partial(jax.jit, static_argnames=("block_b", "use_bf16"))
def dueling_dqn_forward(state, w1, b1, wv, bv, wa, ba, *,
                        block_b=256, use_bf16=False):
    """Returns (V, A) exactly like the PyTorch module's forward()."""
    B, D = state.shape
    n_actions = wa.shape[1]
    n_head = 1 + n_actions
    n_pad = max(128, _round_up(n_head, 128))   # lane-dense fused-head width

    # --- Fuse V|A heads into one zero-padded [512, n_pad] weight + bias. ---
    w_head = jnp.zeros((HIDDEN, n_pad), jnp.float32)
    w_head = w_head.at[:, 0:1].set(wv).at[:, 1:n_head].set(wa)
    b_head = jnp.zeros((1, n_pad), jnp.float32)
    b_head = b_head.at[:, 0:1].set(bv).at[:, 1:n_head].set(ba)

    # --- Batch tiling: pad B up to a multiple of the batch tile. ---
    tb = min(block_b, _round_up(B, 8))
    b_pad = _round_up(B, tb)
    x = state if b_pad == B else jnp.pad(state, ((0, b_pad - B), (0, 0)))

    if use_bf16:
        # bf16 activations/weights, f32 accumulation + f32 bias/ReLU.
        x = x.astype(jnp.bfloat16)
        w1 = w1.astype(jnp.bfloat16)
        w_head = w_head.astype(jnp.bfloat16)

    act_bytes = 2 if use_bf16 else 4
    grid = (b_pad // tb,)
    out = pl.pallas_call(
        dueling_dqn_kernel,
        out_shape=jax.ShapeDtypeStruct((b_pad, n_pad), jnp.float32),
        grid_spec=pltpu.PrefetchScalarGridSpec(
            num_scalar_prefetch=0,
            grid=grid,
            in_specs=[
                pl.BlockSpec((tb, D), lambda i: (i, 0)),          # state tile
                pl.BlockSpec((D, HIDDEN), lambda i: (0, 0)),      # w1 (resident)
                pl.BlockSpec((1, HIDDEN), lambda i: (0, 0)),      # b1 (resident)
                pl.BlockSpec((HIDDEN, n_pad), lambda i: (0, 0)),  # fused head W
                pl.BlockSpec((1, n_pad), lambda i: (0, 0)),       # fused head b
            ],
            out_specs=pl.BlockSpec((tb, n_pad), lambda i: (i, 0)),
        ),
        compiler_params=pltpu.CompilerParams(
            dimension_semantics=("parallel",),
            vmem_limit_bytes=_vmem_limit_bytes(tb, D, n_pad, act_bytes),
        ),
    )(x, w1, b1, w_head, b_head)

    # Strip batch padding and split the lane-dense slab back into V and A.
    out = out[:B]
    V = out[:, 0:1]
    A = out[:, 1:n_head]
    return V, A


def init_params(key, input_dim, n_actions):
    """Deterministic PyTorch-style (uniform +/- 1/sqrt(fan_in)) init, [in, out] layout."""
    ks = jax.random.split(key, 6)

    def lin(kw, kb, fan_in, fan_out):
        bound = 1.0 / jnp.sqrt(jnp.float32(fan_in))
        w = jax.random.uniform(kw, (fan_in, fan_out), jnp.float32, -bound, bound)
        b = jax.random.uniform(kb, (1, fan_out), jnp.float32, -bound, bound)
        return w, b

    w1, b1 = lin(ks[0], ks[1], input_dim, HIDDEN)
    wv, bv = lin(ks[2], ks[3], HIDDEN, 1)
    wa, ba = lin(ks[4], ks[5], HIDDEN, n_actions)
    return w1, b1, wv, bv, wa, ba


def reference_forward(state, w1, b1, wv, bv, wa, ba):
    h = jnp.maximum(state @ w1 + b1, 0.0)
    return h @ wv + bv, h @ wa + ba


if __name__ == "__main__":
    key = jax.random.PRNGKey(0)
    B, D, n_actions = 8, 32, 4          # small shapes: input_dims=(32,), 4 actions

    k_x, k_p = jax.random.split(key)
    state = jax.random.normal(k_x, (B, D), jnp.float32)
    params = init_params(k_p, D, n_actions)

    V, A = dueling_dqn_forward(state, *params)
    jax.block_until_ready((V, A))

    V_ref, A_ref = reference_forward(state, *params)
    assert V.shape == (B, 1) and A.shape == (B, n_actions)
    assert jnp.allclose(V, V_ref, atol=1e-5, rtol=1e-5)
    assert jnp.allclose(A, A_ref, atol=1e-5, rtol=1e-5)

    # Also exercise a batch that is not a multiple of the tile / 8.
    state2 = jax.random.normal(jax.random.PRNGKey(1), (13, D), jnp.float32)
    V2, A2 = dueling_dqn_forward(state2, *params)
    jax.block_until_ready((V2, A2))
    V2_ref, A2_ref = reference_forward(state2, *params)
    assert jnp.allclose(V2, V2_ref, atol=1e-5, rtol=1e-5)
    assert jnp.allclose(A2, A2_ref, atol=1e-5, rtol=1e-5)

    print("KERNEL_OK")
</pallas_src>

<mosaic_0001>
module attributes {stable_mosaic.version = 11 : i64} {
  func.func @dueling_dqn_kernel(%arg0: i32, %arg1: memref<8x32xf32, #tpu.memory_space<vmem>>, %arg2: memref<32x512xf32, #tpu.memory_space<vmem>>, %arg3: memref<1x512xf32, #tpu.memory_space<vmem>>, %arg4: memref<512x128xf32, #tpu.memory_space<vmem>>, %arg5: memref<1x128xf32, #tpu.memory_space<vmem>>, %arg6: memref<8x128xf32, #tpu.memory_space<vmem>>) attributes {dimension_semantics = [#tpu.dimension_semantics<parallel>], iteration_bounds = array<i64: 1>, scalar_prefetch = 0 : i64, scratch_operands = 0 : i64, tpu.core_type = #tpu.core_type<tc>, window_params = [{transform_indices = @transform_0, window_bounds = array<i64: 8, 32>}, {pipeline_mode = #tpu.pipeline_mode<synchronous>, transform_indices = @transform_1, window_bounds = array<i64: 32, 512>}, {pipeline_mode = #tpu.pipeline_mode<synchronous>, transform_indices = @transform_2, window_bounds = array<i64: 1, 512>}, {pipeline_mode = #tpu.pipeline_mode<synchronous>, transform_indices = @transform_3, window_bounds = array<i64: 512, 128>}, {pipeline_mode = #tpu.pipeline_mode<synchronous>, transform_indices = @transform_4, window_bounds = array<i64: 1, 128>}, {transform_indices = @transform_5, window_bounds = array<i64: 8, 128>}]} {
    %c0 = arith.constant 0 : index
    %c0_0 = arith.constant 0 : index
    %0 = vector.load %arg1[%c0, %c0_0] : memref<8x32xf32, #tpu.memory_space<vmem>>, vector<8x32xf32>
    %c0_1 = arith.constant 0 : index
    %c0_2 = arith.constant 0 : index
    %1 = vector.load %arg2[%c0_1, %c0_2] : memref<32x512xf32, #tpu.memory_space<vmem>>, vector<32x512xf32>
    %cst = arith.constant dense<0.000000e+00> : vector<8x512xf32>
    %2 = tpu.matmul %0, %1, %cst {dimension_numbers = #tpu.dot_dimension_numbers<[1], [0], [0], [1], [0, 0, 1, 1], [], []>} : vector<8x32xf32>, vector<32x512xf32>, vector<8x512xf32> -> vector<8x512xf32>
    %c0_3 = arith.constant 0 : index
    %c0_4 = arith.constant 0 : index
    %3 = vector.load %arg3[%c0_3, %c0_4] : memref<1x512xf32, #tpu.memory_space<vmem>>, vector<1x512xf32>
    %4 = vector.broadcast %3 : vector<1x512xf32> to vector<8x512xf32>
    %5 = arith.addf %2, %4 : vector<8x512xf32>
    %cst_5 = arith.constant 0.000000e+00 : f32
    %6 = vector.broadcast %cst_5 : f32 to vector<8x512xf32>
    %7 = arith.maximumf %5, %6 : vector<8x512xf32>
    %c0_6 = arith.constant 0 : index
    %c0_7 = arith.constant 0 : index
    %8 = vector.load %arg4[%c0_6, %c0_7] : memref<512x128xf32, #tpu.memory_space<vmem>>, vector<512x128xf32>
    %cst_8 = arith.constant dense<0.000000e+00> : vector<8x128xf32>
    %9 = tpu.matmul %7, %8, %cst_8 {dimension_numbers = #tpu.dot_dimension_numbers<[1], [0], [0], [1], [0, 0, 1, 1], [], []>} : vector<8x512xf32>, vector<512x128xf32>, vector<8x128xf32> -> vector<8x128xf32>
    %c0_9 = arith.constant 0 : index
    %c0_10 = arith.constant 0 : index
    %10 = vector.load %arg5[%c0_9, %c0_10] : memref<1x128xf32, #tpu.memory_space<vmem>>, vector<1x128xf32>
    %11 = vector.broadcast %10 : vector<1x128xf32> to vector<8x128xf32>
    %12 = arith.addf %9, %11 : vector<8x128xf32>
    %c0_11 = arith.constant 0 : index
    %c0_12 = arith.constant 0 : index
    %13 = vector.load %arg6[%c0_11, %c0_12] : memref<8x128xf32, #tpu.memory_space<vmem>>, vector<8x128xf32>
    tpu.vector_store %arg6[%c0_11, %c0_12], %12 {strides = array<i32>} : memref<8x128xf32, #tpu.memory_space<vmem>>, vector<8x128xf32>,
    return
  }
  func.func @transform_0(%arg0: i32) -> (i32, i32) {
    %c0_i32 = arith.constant 0 : i32
    %c0_i32_0 = arith.constant 0 : i32
    return %arg0, %c0_i32 : i32, i32
  }
  func.func @transform_1(%arg0: i32) -> (i32, i32) {
    %c0_i32 = arith.constant 0 : i32
    %c0_i32_0 = arith.constant 0 : i32
    %c0_i32_1 = arith.constant 0 : i32
    return %c0_i32, %c0_i32_0 : i32, i32
  }
  func.func @transform_2(%arg0: i32) -> (i32, i32) {
    %c0_i32 = arith.constant 0 : i32
    %c0_i32_0 = arith.constant 0 : i32
    %c0_i32_1 = arith.constant 0 : i32
    return %c0_i32, %c0_i32_0 : i32, i32
  }
  func.func @transform_3(%arg0: i32) -> (i32, i32) {
    %c0_i32 = arith.constant 0 : i32
    %c0_i32_0 = arith.constant 0 : i32
    %c0_i32_1 = arith.constant 0 : i32
    return %c0_i32, %c0_i32_0 : i32, i32
  }
  func.func @transform_4(%arg0: i32) -> (i32, i32) {
    %c0_i32 = arith.constant 0 : i32
    %c0_i32_0 = arith.constant 0 : i32
    %c0_i32_1 = arith.constant 0 : i32
    return %c0_i32, %c0_i32_0 : i32, i32
  }
  func.func @transform_5(%arg0: i32) -> (i32, i32) {
    %c0_i32 = arith.constant 0 : i32
    %c0_i32_0 = arith.constant 0 : i32
    return %arg0, %c0_i32 : i32, i32
  }
}

</mosaic_0001>

<llo_original>
// kernel: dueling_dqn_forward.1
$region0: #{dueling_dqn_forward.1}
  #allocation0 [shape = 'u32[]', space=smem, size = 0x4, offset = 0x4, fixed_abs, tag = 'smem constant byte address 0x4 - core index']
  #allocation1 [shape = 'u32[72,128]{1,0:T(1,128)}', space=vmem, size = 0x9000, scoped, tag = 'internal scratch']
  %s0 = inlined_call_operand.vmem [shape: f32[8,32], index: 0, kind: input, shape index: {}]
  %s1 = inlined_call_operand.vmem [shape: f32[32,512], index: 1, kind: input, shape index: {}]
  %s2 = inlined_call_operand.vmem [shape: f32[1,512], index: 2, kind: input, shape index: {}]
  %s3 = inlined_call_operand.vmem [shape: f32[512,128], index: 3, kind: input, shape index: {}]
  %s4 = inlined_call_operand.vmem [shape: f32[1,128], index: 4, kind: input, shape index: {}]
  %s5 = inlined_call_operand.vmem [shape: f32[8,128], index: 5, kind: output, shape index: {}]
  %s6 = sld [smem:[#allocation0]]
  $region30: #{dueling_dqn_forward.1} parent=0
    _
  %s8 = ssub.s32 1, %s6
  %s9 = scalar_select 0, %s8, %s6
  // Predicated region
  $region2: #{dueling_dqn_forward.1} parent=0 // pred_check
    _
  $region3: #{dueling_dqn_forward.1} parent=0 // pred_check_branch
    %11 = sbr.rel (0) target = $region5
  $region4: #{dueling_dqn_forward.1} parent=0 // pred_region
    _
  $region5: #{dueling_dqn_forward.1} parent=0 // pred_fallthru
    _
  // Predicated region
  $region6: #{dueling_dqn_forward.1} parent=0 // pred_check
    _
  $region7: #{dueling_dqn_forward.1} parent=0 // pred_check_branch
    %13 = sbr.rel (0) target = $region9
  $region8: #{dueling_dqn_forward.1} parent=0 // pred_region
    _
  $region9: #{dueling_dqn_forward.1} parent=0 // pred_fallthru
    _
  // Predicated region
  $region10: #{dueling_dqn_forward.1} parent=0 // pred_check
    _
  $region11: #{dueling_dqn_forward.1} parent=0 // pred_check_branch
    %15 = sbr.rel (0) target = $region13
  $region12: #{dueling_dqn_forward.1} parent=0 // pred_region
    _
  $region13: #{dueling_dqn_forward.1} parent=0 // pred_fallthru
    _
  // Predicated region
  $region14: #{dueling_dqn_forward.1} parent=0 // pred_check
    _
  $region15: #{dueling_dqn_forward.1} parent=0 // pred_check_branch
    %17 = sbr.rel (0) target = $region17
  $region16: #{dueling_dqn_forward.1} parent=0 // pred_region
    _
  $region17: #{dueling_dqn_forward.1} parent=0 // pred_fallthru
    _
  // Predicated region
  $region18: #{dueling_dqn_forward.1} parent=0 // pred_check
    _
  $region19: #{dueling_dqn_forward.1} parent=0 // pred_check_branch
    %19 = sbr.rel (0) target = $region21
  $region20: #{dueling_dqn_forward.1} parent=0 // pred_region
    _
  $region21: #{dueling_dqn_forward.1} parent=0 // pred_fallthru
    _
  %v20 = vld [vmem:[%s0] sm:$0xff]
  %v21 = vld [vmem:[%s1] sm:$0xff]
  %v22 = vld [vmem:[%s1 + $0x8] sm:$0xff]
  %v23 = vld [vmem:[%s1 + $0x10] sm:$0xff]
  %v24 = vld [vmem:[%s1 + $0x18] sm:$0xff]
  %v25 = vld [vmem:[%s1 + $0x20] sm:$0xff]
  %v26 = vld [vmem:[%s1 + $0x28] sm:$0xff]
  %v27 = vld [vmem:[%s1 + $0x30] sm:$0xff]
  %v28 = vld [vmem:[%s1 + $0x38] sm:$0xff]
  %v29 = vld [vmem:[%s1 + $0x40] sm:$0xff]
  %v30 = vld [vmem:[%s1 + $0x48] sm:$0xff]
  %v31 = vld [vmem:[%s1 + $0x50] sm:$0xff]
  %v32 = vld [vmem:[%s1 + $0x58] sm:$0xff]
  %v33 = vld [vmem:[%s1 + $0x60] sm:$0xff]
  %v34 = vld [vmem:[%s1 + $0x68] sm:$0xff]
  %v35 = vld [vmem:[%s1 + $0x70] sm:$0xff]
  %v36 = vld [vmem:[%s1 + $0x78] sm:$0xff]
  %v37 = vld [vmem:[%s2] sm:$0xf]
  %v39 = vperm.slane %v37, 0
  %v40 = vperm.slane %v37, 1
  %v41 = vperm.slane %v37, 2
  %v42 = vperm.slane %v37, 3
  %vm47 = vcmask 261120
  %v49 = vsel %vm47, %v20, 0
  %51 = vmatpush.msra.mxu0 0.0
  %52 = vmatpush.msra.mxu0 0.0
  %53 = vmatpush.msra.mxu0 0.0
  %54 = vmatpush.msra.mxu0 0.0
  %55 = vmatpush.msra.mxu0 0.0
  %56 = vmatpush.msra.mxu0 0.0
  %57 = vmatpush.msra.mxu0 0.0
  %58 = vmatpush.msra.mxu0 0.0
  %59 = vmatpush.msra.mxu0 0.0
  %60 = vmatpush.msra.mxu0 0.0
  %61 = vmatpush.msra.mxu0 0.0
  %62 = vmatpush.msra.mxu0 0.0
  %63 = vmatpush.msra.mxu0 %v33
  %64 = vmatpush.msra.mxu0 %v29
  %65 = vmatpush.msra.mxu0 %v25
  %66 = vmatpush.msra.mxu0 %v21
  %67 = vmatmul.f32.gmra.mxu0 %v49
  %v68 = vpop.f32.mrf.mxu0
  %v69 = vadd.f32 %v39, %v68
  %70 = vdwg.mxu0
  %71 = vmatpush.msra.mxu0 0.0
  %72 = vmatpush.msra.mxu0 0.0
  %73 = vmatpush.msra.mxu0 0.0
  %74 = vmatpush.msra.mxu0 0.0
  %75 = vmatpush.msra.mxu0 0.0
  %76 = vmatpush.msra.mxu0 0.0
  %77 = vmatpush.msra.mxu0 0.0
  %78 = vmatpush.msra.mxu0 0.0
  %79 = vmatpush.msra.mxu0 0.0
  %80 = vmatpush.msra.mxu0 0.0
  %81 = vmatpush.msra.mxu0 0.0
  %82 = vmatpush.msra.mxu0 0.0
  %83 = vmatpush.msra.mxu0 %v34
  %84 = vmatpush.msra.mxu0 %v30
  %85 = vmatpush.msra.mxu0 %v26
  %86 = vmatpush.msra.mxu0 %v22
  %87 = vmatmul.f32.gmra.mxu0 %v49
  %v88 = vpop.f32.mrf.mxu0
  %v89 = vadd.f32 %v40, %v88
  %90 = vdwg.mxu0
  %91 = vmatpush.msra.mxu0 0.0
  %92 = vmatpush.msra.mxu0 0.0
  %93 = vmatpush.msra.mxu0 0.0
  %94 = vmatpush.msra.mxu0 0.0
  %95 = vmatpush.msra.mxu0 0.0
  %96 = vmatpush.msra.mxu0 0.0
  %97 = vmatpush.msra.mxu0 0.0
  %98 = vmatpush.msra.mxu0 0.0
  %99 = vmatpush.msra.mxu0 0.0
  %100 = vmatpush.msra.mxu0 0.0
  %101 = vmatpush.msra.mxu0 0.0
  %102 = vmatpush.msra.mxu0 0.0
  %103 = vmatpush.msra.mxu0 %v35
  %104 = vmatpush.msra.mxu0 %v31
  %105 = vmatpush.msra.mxu0 %v27
  %106 = vmatpush.msra.mxu0 %v23
  %107 = vmatmul.f32.gmra.mxu0 %v49
  %v108 = vpop.f32.mrf.mxu0
  %v109 = vadd.f32 %v41, %v108
  %110 = vdwg.mxu0
  %111 = vmatpush.msra.mxu0 0.0
  %112 = vmatpush.msra.mxu0 0.0
  %113 = vmatpush.msra.mxu0 0.0
  %114 = vmatpush.msra.mxu0 0.0
  %115 = vmatpush.msra.mxu0 0.0
  %116 = vmatpush.msra.mxu0 0.0
  %117 = vmatpush.msra.mxu0 0.0
  %118 = vmatpush.msra.mxu0 0.0
  %119 = vmatpush.msra.mxu0 0.0
  %120 = vmatpush.msra.mxu0 0.0
  %121 = vmatpush.msra.mxu0 0.0
  %122 = vmatpush.msra.mxu0 0.0
  %123 = vmatpush.msra.mxu0 %v36
  %124 = vmatpush.msra.mxu0 %v32
  %125 = vmatpush.msra.mxu0 %v28
  %126 = vmatpush.msra.mxu0 %v24
  %127 = vmatmul.f32.gmra.mxu0 %v49
  %v128 = vpop.f32.mrf.mxu0
  %v129 = vadd.f32 %v42, %v128
  %130 = vdwg.mxu0
  %v131 = vmax.f32 %v69, 0.0
  %v132 = vmax.f32 %v89, 0.0
  %v133 = vmax.f32 %v109, 0.0
  %v134 = vmax.f32 %v129, 0.0
  %v135 = vld [vmem:[%s3] sm:$0xff]
  %v136 = vld [vmem:[%s3 + $0x8] sm:$0xff]
  %v137 = vld [vmem:[%s3 + $0x10] sm:$0xff]
  %v138 = vld [vmem:[%s3 + $0x18] sm:$0xff]
  %v139 = vld [vmem:[%s3 + $0x20] sm:$0xff]
  %v140 = vld [vmem:[%s3 + $0x28] sm:$0xff]
  %v141 = vld [vmem:[%s3 + $0x30] sm:$0xff]
  %v142 = vld [vmem:[%s3 + $0x38] sm:$0xff]
  %v143 = vld [vmem:[%s3 + $0x40] sm:$0xff]
  %v144 = vld [vmem:[%s3 + $0x48] sm:$0xff]
  %v145 = vld [vmem:[%s3 + $0x50] sm:$0xff]
  %v146 = vld [vmem:[%s3 + $0x58] sm:$0xff]
  %v147 = vld [vmem:[%s3 + $0x60] sm:$0xff]
  %v148 = vld [vmem:[%s3 + $0x68] sm:$0xff]
  %v149 = vld [vmem:[%s3 + $0x70] sm:$0xff]
  %v150 = vld [vmem:[%s3 + $0x78] sm:$0xff]
  %v151 = vld [vmem:[%s3 + $0x80] sm:$0xff]
  %v152 = vld [vmem:[%s3 + $0x88] sm:$0xff]
  %v153 = vld [vmem:[%s3 + $0x90] sm:$0xff]
  %v154 = vld [vmem:[%s3 + $0x98] sm:$0xff]
  %v155 = vld [vmem:[%s3 + $0xa0] sm:$0xff]
  %v156 = vld [vmem:[%s3 + $0xa8] sm:$0xff]
  %v157 = vld [vmem:[%s3 + $0xb0] sm:$0xff]
  %v158 = vld [vmem:[%s3 + $0xb8] sm:$0xff]
  %v159 = vld [vmem:[%s3 + $0xc0] sm:$0xff]
  %v160 = vld [vmem:[%s3 + $0xc8] sm:$0xff]
  %v161 = vld [vmem:[%s3 + $0xd0] sm:$0xff]
  %v162 = vld [vmem:[%s3 + $0xd8] sm:$0xff]
  %v163 = vld [vmem:[%s3 + $0xe0] sm:$0xff]
  %v164 = vld [vmem:[%s3 + $0xe8] sm:$0xff]
  %v165 = vld [vmem:[%s3 + $0xf0] sm:$0xff]
  %v166 = vld [vmem:[%s3 + $0xf8] sm:$0xff]
  %v167 = vld [vmem:[%s3 + $0x100] sm:$0xff]
  %v168 = vld [vmem:[%s3 + $0x108] sm:$0xff]
  %v169 = vld [vmem:[%s3 + $0x110] sm:$0xff]
  %v170 = vld [vmem:[%s3 + $0x118] sm:$0xff]
  %v171 = vld [vmem:[%s3 + $0x120] sm:$0xff]
  %v172 = vld [vmem:[%s3 + $0x128] sm:$0xff]
  %v173 = vld [vmem:[%s3 + $0x130] sm:$0xff]
  %v174 = vld [vmem:[%s3 + $0x138] sm:$0xff]
  %v175 = vld [vmem:[%s3 + $0x140] sm:$0xff]
  %v176 = vld [vmem:[%s3 + $0x148] sm:$0xff]
  %v177 = vld [vmem:[%s3 + $0x150] sm:$0xff]
  %v178 = vld [vmem:[%s3 + $0x158] sm:$0xff]
  %v179 = vld [vmem:[%s3 + $0x160] sm:$0xff]
  %v180 = vld [vmem:[%s3 + $0x168] sm:$0xff]
  %v181 = vld [vmem:[%s3 + $0x170] sm:$0xff]
  %v182 = vld [vmem:[%s3 + $0x178] sm:$0xff]
  %v183 = vld [vmem:[%s3 + $0x180] sm:$0xff]
  %v184 = vld [vmem:[%s3 + $0x188] sm:$0xff]
  %v185 = vld [vmem:[%s3 + $0x190] sm:$0xff]
  %v186 = vld [vmem:[%s3 + $0x198] sm:$0xff]
  %v187 = vld [vmem:[%s3 + $0x1a0] sm:$0xff]
  %v188 = vld [vmem:[%s3 + $0x1a8] sm:$0xff]
  %v189 = vld [vmem:[%s3 + $0x1b0] sm:$0xff]
  %v190 = vld [vmem:[%s3 + $0x1b8] sm:$0xff]
  %v191 = vld [vmem:[%s3 + $0x1c0] sm:$0xff]
  %v192 = vld [vmem:[%s3 + $0x1c8] sm:$0xff]
  %v193 = vld [vmem:[%s3 + $0x1d0] sm:$0xff]
  %v194 = vld [vmem:[%s3 + $0x1d8] sm:$0xff]
  %v195 = vld [vmem:[%s3 + $0x1e0] sm:$0xff]
  %v196 = vld [vmem:[%s3 + $0x1e8] sm:$0xff]
  %v197 = vld [vmem:[%s3 + $0x1f0] sm:$0xff]
  %v198 = vld [vmem:[%s3 + $0x1f8] sm:$0xff]
  %v199 = vld [vmem:[%s4] sm:$0x1]
  %v201 = vperm.slane %v199, 0
  %203 = vmatpush.msra.mxu0 %v150
  %204 = vmatpush.msra.mxu0 %v149
  %205 = vmatpush.msra.mxu0 %v148
  %206 = vmatpush.msra.mxu0 %v147
  %207 = vmatpush.msra.mxu0 %v146
  %208 = vmatpush.msra.mxu0 %v145
  %209 = vmatpush.msra.mxu0 %v144
  %210 = vmatpush.msra.mxu0 %v143
  %211 = vmatpush.msra.mxu0 %v142
  %212 = vmatpush.msra.mxu0 %v141
  %213 = vmatpush.msra.mxu0 %v140
  %214 = vmatpush.msra.mxu0 %v139
  %215 = vmatpush.msra.mxu0 %v138
  %216 = vmatpush.msra.mxu0 %v137
  %217 = vmatpush.msra.mxu0 %v136
  %218 = vmatpush.msra.mxu0 %v135
  %219 = vmatmul.f32.gmra.mxu0 %v131
  %v220 = vpop.f32.mrf.mxu0
  %v221 = vadd.f32 %v201, %v220
  %222 = vdwg.mxu0
  %223 = vmatpush.msra.mxu0 %v166
  %224 = vmatpush.msra.mxu0 %v165
  %225 = vmatpush.msra.mxu0 %v164
  %226 = vmatpush.msra.mxu0 %v163
  %227 = vmatpush.msra.mxu0 %v162
  %228 = vmatpush.msra.mxu0 %v161
  %229 = vmatpush.msra.mxu0 %v160
  %230 = vmatpush.msra.mxu0 %v159
  %231 = vmatpush.msra.mxu0 %v158
  %232 = vmatpush.msra.mxu0 %v157
  %233 = vmatpush.msra.mxu0 %v156
  %234 = vmatpush.msra.mxu0 %v155
  %235 = vmatpush.msra.mxu0 %v154
  %236 = vmatpush.msra.mxu0 %v153
  %237 = vmatpush.msra.mxu0 %v152
  %238 = vmatpush.msra.mxu0 %v151
  %239 = vmatmul.f32.gmra.mxu0 %v132
  %v240 = vpop.f32.mrf.mxu0
  %v241 = vadd.f32 %v221, %v240
  %242 = vdwg.mxu0
  %243 = vmatpush.msra.mxu0 %v182
  %244 = vmatpush.msra.mxu0 %v181
  %245 = vmatpush.msra.mxu0 %v180
  %246 = vmatpush.msra.mxu0 %v179
  %247 = vmatpush.msra.mxu0 %v178
  %248 = vmatpush.msra.mxu0 %v177
  %249 = vmatpush.msra.mxu0 %v176
  %250 = vmatpush.msra.mxu0 %v175
  %251 = vmatpush.msra.mxu0 %v174
  %252 = vmatpush.msra.mxu0 %v173
  %253 = vmatpush.msra.mxu0 %v172
  %254 = vmatpush.msra.mxu0 %v171
  %255 = vmatpush.msra.mxu0 %v170
  %256 = vmatpush.msra.mxu0 %v169
  %257 = vmatpush.msra.mxu0 %v168
  %258 = vmatpush.msra.mxu0 %v167
  %259 = vmatmul.f32.gmra.mxu0 %v133
  %v260 = vpop.f32.mrf.mxu0
  %v261 = vadd.f32 %v241, %v260
  %262 = vdwg.mxu0
  %263 = vmatpush.msra.mxu0 %v198
  %264 = vmatpush.msra.mxu0 %v197
  %265 = vmatpush.msra.mxu0 %v196
  %266 = vmatpush.msra.mxu0 %v195
  %267 = vmatpush.msra.mxu0 %v194
  %268 = vmatpush.msra.mxu0 %v193
  %269 = vmatpush.msra.mxu0 %v192
  %270 = vmatpush.msra.mxu0 %v191
  %271 = vmatpush.msra.mxu0 %v190
  %272 = vmatpush.msra.mxu0 %v189
  %273 = vmatpush.msra.mxu0 %v188
  %274 = vmatpush.msra.mxu0 %v187
  %275 = vmatpush.msra.mxu0 %v186
  %276 = vmatpush.msra.mxu0 %v185
  %277 = vmatpush.msra.mxu0 %v184
  %278 = vmatpush.msra.mxu0 %v183
  %279 = vmatmul.f32.gmra.mxu0 %v134
  %v280 = vpop.f32.mrf.mxu0
  %v281 = vadd.f32 %v261, %v280
  %282 = vdwg.mxu0
  %283 = vst [vmem:[%s5] sm:$0xff] %v281
  // Predicated region
  $region22: #{dueling_dqn_forward.1} parent=0 // pred_check
    _
  $region23: #{dueling_dqn_forward.1} parent=0 // pred_check_branch
    %285 = sbr.rel (0) target = $region25
  $region24: #{dueling_dqn_forward.1} parent=0 // pred_region
    _
  $region25: #{dueling_dqn_forward.1} parent=0 // pred_fallthru
    _
  // Predicated region
  $region26: #{dueling_dqn_forward.1} parent=0 // pred_check
    _
  $region27: #{dueling_dqn_forward.1} parent=0 // pred_check_branch
    %287 = sbr.rel (0) target = $region29
  $region28: #{dueling_dqn_forward.1} parent=0 // pred_region
    _
  $region29: #{dueling_dqn_forward.1} parent=0 // pred_fallthru
    _

</llo_original>
